<compile_context>
chip_gen: v5e
topology: v5e:2x2
jax: 0.10.0
libtpu: 0.0.40
codegen_flags: <defaults>
</compile_context>

<pallas_src>
import jax
import jax.numpy as jnp
from jax.experimental import pallas as pl
from jax.experimental.pallas import tpu as pltpu


def _round_up(v, m):
    return (v + m - 1) // m * m


def _make_ffn_kernel(th, direct_acc, approx_gelu):
    """th: hidden chunk width. direct_acc: accumulate straight into o_ref."""

    def kernel(x_ref, w1a_ref, w1g_ref, w2_ref, b1a_ref, b1g_ref, b2_ref,
               o_ref, *scratch):
        k = pl.program_id(1)
        acc = o_ref if direct_acc else scratch[0]

        @pl.when(k == 0)
        def _():
            acc[...] = jnp.zeros_like(acc)

        x = x_ref[...]                                        # (TM, Dp)

        # Resident biases, sliced to the current hidden chunk.
        off = pl.multiple_of(k * th, 128)
        b1a = b1a_ref[:, pl.ds(off, th)]                      # (1, TH) f32
        b1g = b1g_ref[:, pl.ds(off, th)]

        # First projection, value / gate halves: (TM, Dp) @ (Dp, TH) -> f32.
        a = jnp.dot(x, w1a_ref[...], preferred_element_type=jnp.float32) + b1a
        g = jnp.dot(x, w1g_ref[...], preferred_element_type=jnp.float32) + b1g

        if approx_gelu:
            # tanh GELU routes through the EUP slot (cheaper than the erf
            # polynomial on the VPU); numerics differ slightly from torch.
            z = a * jax.nn.gelu(g, approximate=True)
        else:
            # Exact (erf) GELU — matches torch.nn.functional.gelu default.
            z = (0.5 * a) * g * (1.0 + jax.lax.erf(g * 0.7071067811865476))

        # Dropout(p=0.0) is identity -> no-op.

        # Second projection, accumulated over hidden chunks.
        acc[...] += jnp.dot(z.astype(w2_ref.dtype), w2_ref[...],
                            preferred_element_type=jnp.float32)

        @pl.when(k == pl.num_programs(1) - 1)
        def _():
            o_ref[...] = (acc[...] + b2_ref[...]).astype(o_ref.dtype)

    return kernel


def _vmem_capacity_bytes():
    try:
        info = pltpu.get_tpu_info()
        cap = getattr(info, "vmem_capacity_bytes", None)
        if cap:
            return int(cap)
    except Exception:
        pass
    return 64 * 1024 * 1024          # conservative (v7x-sized) default


def _choose_row_tile(M, tm):
    """Pick (TM, Mp), both multiples of 8, limiting padding waste to ~25%."""
    M8 = _round_up(max(M, 8), 8)
    if M8 <= tm:
        # Split into 2 row tiles when free so the "parallel" axis can feed
        # both TensorCores on v7x (costs one extra tiny grid step elsewhere).
        if M8 >= 16 and M8 % 16 == 0:
            return M8 // 2, M8
        return M8, M8
    t = tm
    while t > 64:
        mp = _round_up(M8, t)
        if mp - M <= max(M // 4, t // 4):
            return t, mp
        t //= 2
    return t, _round_up(M8, t)


def feed_forward(x, w1, b1, w2, b2, *, tm=512, compute_dtype=jnp.bfloat16,
                 approx_gelu=False):
    """GEGLU FeedForward.  x:(B,S,D), w1:(D,2H), b1:(2H,), w2:(H,D), b2:(D,)."""
    B, S, D = x.shape
    H = w2.shape[0]
    assert w1.shape == (D, 2 * H) and b1.shape == (2 * H,)
    assert w2.shape == (H, D) and b2.shape == (D,)

    out_dtype = x.dtype
    direct_acc = (out_dtype == jnp.float32)
    isz = jnp.dtype(compute_dtype).itemsize
    out_isz = jnp.dtype(out_dtype).itemsize

    M = B * S
    x2d = x.reshape(M, D)

    # ---- generation-aware VMEM budget --------------------------------------
    vmem_cap = _vmem_capacity_bytes()
    vmem_limit = min(int(vmem_cap * 0.75), 100 * 1024 * 1024)
    budget = int(vmem_limit * 0.85)

    # ---- tile sizes ----------------------------------------------------------
    Dp = D if D % 128 == 0 else _round_up(D, 128)
    Hp128 = _round_up(H, 128)
    TM, Mp = _choose_row_tile(M, tm)

    def fixed_bytes(tm_):
        b = 2 * tm_ * Dp * isz           # x tile, double-buffered
        b += 2 * tm_ * Dp * out_isz      # out tile, double-buffered
        if not direct_acc:
            b += tm_ * Dp * 4            # f32 accumulator scratch
        b += 2 * 4 * (2 * Hp128 + Dp)    # resident biases (f32)
        return b

    # Keep VMEM headroom for the weight chunks (matters at large Dp on v7x).
    while TM % 16 == 0 and TM > 64 and fixed_bytes(TM) > budget // 2:
        TM //= 2
    gm = Mp // TM

    th_max = (budget - fixed_bytes(TM)) // (6 * Dp * isz)  # 3 dbl-buffered W blocks
    th_max = max(128, (th_max // 128) * 128)

    if H % 128 == 0:
        Hp = H
        cands = [t for t in range(128, H + 1, 128) if H % t == 0 and t <= th_max]
        TH = max(cands) if cands else 128
    else:
        Hp = Hp128
        TH = min(th_max, Hp)
        Hp = _round_up(Hp, TH)
    gk = Hp // TH

    # ---- operand prep (avoid weight copies when layouts already line up) ----
    f32 = jnp.float32
    if Mp != M or Dp != D:
        x_eff = jnp.zeros((Mp, Dp), compute_dtype).at[:M, :D].set(
            x2d.astype(compute_dtype))
    else:
        x_eff = x2d.astype(compute_dtype)

    if Dp != D or Hp != H:
        # Zero padding is exact: padded hidden columns give a=0 and gelu(0)=0,
        # padded input features hit zero weight rows.
        w1_eff = (jnp.zeros((Dp, 2 * Hp), compute_dtype)
                  .at[:D, :H].set(w1[:, :H].astype(compute_dtype))
                  .at[:D, Hp:Hp + H].set(w1[:, H:].astype(compute_dtype)))
        w2_eff = jnp.zeros((Hp, Dp), compute_dtype).at[:H, :D].set(
            w2.astype(compute_dtype))
    else:
        # No per-call padding / splitting: halves selected by index_map only.
        w1_eff = w1.astype(compute_dtype)
        w2_eff = w2.astype(compute_dtype)

    b1a_p = jnp.zeros((1, Hp), f32).at[0, :H].set(b1[:H].astype(f32))
    b1g_p = jnp.zeros((1, Hp), f32).at[0, :H].set(b1[H:].astype(f32))
    b2_p = jnp.zeros((1, Dp), f32).at[0, :D].set(b2.astype(f32))

    # ---- advisory cost estimate (includes output + weight re-streaming) -----
    flops = 2 * Mp * Dp * (2 * Hp) + 2 * Mp * Hp * Dp
    bytes_accessed = (gm * 3 * Dp * Hp * isz   # weights streamed per row tile
                      + Mp * Dp * isz          # x
                      + Mp * Dp * out_isz      # output
                      + 4 * (2 * Hp + Dp))     # biases
    cost = pl.CostEstimate(flops=flops, transcendentals=Mp * Hp,
                           bytes_accessed=bytes_accessed)

    kernel = _make_ffn_kernel(TH, direct_acc, approx_gelu)
    scratch_shapes = [] if direct_acc else [pltpu.VMEM((TM, Dp), jnp.float32)]

    out = pl.pallas_call(
        kernel,
        out_shape=jax.ShapeDtypeStruct((Mp, Dp), out_dtype),
        grid_spec=pltpu.PrefetchScalarGridSpec(
            num_scalar_prefetch=0,
            grid=(gm, gk),
            in_specs=[
                pl.BlockSpec((TM, Dp), lambda i, k: (i, 0)),            # x (resident over k)
                pl.BlockSpec((Dp, TH), lambda i, k: (0, k)),            # W1 value half
                pl.BlockSpec((Dp, TH), lambda i, k, o=gk: (0, k + o)),  # W1 gate half
                pl.BlockSpec((TH, Dp), lambda i, k: (k, 0)),            # W2 chunk
                pl.BlockSpec((1, Hp), lambda i, k: (0, 0)),             # b1 value (resident)
                pl.BlockSpec((1, Hp), lambda i, k: (0, 0)),             # b1 gate (resident)
                pl.BlockSpec((1, Dp), lambda i, k: (0, 0)),             # b2 (resident)
            ],
            out_specs=pl.BlockSpec((TM, Dp), lambda i, k: (i, 0)),
            scratch_shapes=scratch_shapes,
        ),
        compiler_params=pltpu.CompilerParams(
            dimension_semantics=("parallel", "arbitrary"),
            vmem_limit_bytes=vmem_limit,
        ),
        cost_estimate=cost,
    )(x_eff, w1_eff, w1_eff, w2_eff, b1a_p, b1g_p, b2_p)

    return out[:M, :D].reshape(B, S, D)


def _reference(x, w1, b1, w2, b2):
    hi = jax.lax.Precision.HIGHEST
    h = jnp.einsum("bsd,dk->bsk", x, w1, precision=hi) + b1
    hidden = w2.shape[0]
    a, g = h[..., :hidden], h[..., hidden:]
    z = a * jax.nn.gelu(g, approximate=False)
    return jnp.einsum("bsh,hd->bsd", z, w2, precision=hi) + b2


if __name__ == "__main__":
    key = jax.random.PRNGKey(0)
    B, S, dim, mult = 2, 8, 32, 4
    hidden = dim * mult          # 128
    two_h = hidden * 2           # 256

    k_x, k_w1, k_b1, k_w2, k_b2 = jax.random.split(key, 5)
    x = jax.random.normal(k_x, (B, S, dim), dtype=jnp.float32)

    # Deterministic init mimicking nn.Linear's uniform(-1/sqrt(fan_in), ...).
    lim1 = 1.0 / jnp.sqrt(jnp.float32(dim))
    lim2 = 1.0 / jnp.sqrt(jnp.float32(hidden))
    w1 = jax.random.uniform(k_w1, (dim, two_h), jnp.float32, -lim1, lim1)
    b1 = jax.random.uniform(k_b1, (two_h,), jnp.float32, -lim1, lim1)
    w2 = jax.random.uniform(k_w2, (hidden, dim), jnp.float32, -lim2, lim2)
    b2 = jax.random.uniform(k_b2, (dim,), jnp.float32, -lim2, lim2)

    y_ref = _reference(x, w1, b1, w2, b2)

    # f32 compute path (torch-exact semantics, direct accumulation into out).
    y_f32 = feed_forward(x, w1, b1, w2, b2, compute_dtype=jnp.float32)
    jax.block_until_ready(y_f32)
    assert y_f32.shape == (B, S, dim)
    assert jnp.allclose(y_f32, y_ref, atol=5e-3, rtol=5e-3)

    # Default bf16 MXU path (f32 accumulation); documented looser tolerance.
    y_bf16 = feed_forward(x, w1, b1, w2, b2)
    jax.block_until_ready(y_bf16)
    assert y_bf16.shape == (B, S, dim)
    assert jnp.allclose(y_bf16, y_ref, atol=5e-2, rtol=5e-2)

    print("KERNEL_OK")
</pallas_src>

<mosaic_0001>
module attributes {stable_mosaic.version = 11 : i64} {
  func.func @kernel(%arg0: i32, %arg1: i32, %arg2: memref<8x128xf32, #tpu.memory_space<vmem>>, %arg3: memref<128x128xf32, #tpu.memory_space<vmem>>, %arg4: memref<128x128xf32, #tpu.memory_space<vmem>>, %arg5: memref<128x128xf32, #tpu.memory_space<vmem>>, %arg6: memref<1x128xf32, #tpu.memory_space<vmem>>, %arg7: memref<1x128xf32, #tpu.memory_space<vmem>>, %arg8: memref<1x128xf32, #tpu.memory_space<vmem>>, %arg9: memref<8x128xf32, #tpu.memory_space<vmem>>) attributes {dimension_semantics = [#tpu.dimension_semantics<parallel>, #tpu.dimension_semantics<arbitrary>], iteration_bounds = array<i64: 2, 1>, scalar_prefetch = 0 : i64, scratch_operands = 0 : i64, tpu.core_type = #tpu.core_type<tc>, window_params = [{transform_indices = @transform_0, window_bounds = array<i64: 8, 128>}, {transform_indices = @transform_1, window_bounds = array<i64: 128, 128>}, {transform_indices = @transform_2, window_bounds = array<i64: 128, 128>}, {transform_indices = @transform_3, window_bounds = array<i64: 128, 128>}, {pipeline_mode = #tpu.pipeline_mode<synchronous>, transform_indices = @transform_4, window_bounds = array<i64: 1, 128>}, {pipeline_mode = #tpu.pipeline_mode<synchronous>, transform_indices = @transform_5, window_bounds = array<i64: 1, 128>}, {pipeline_mode = #tpu.pipeline_mode<synchronous>, transform_indices = @transform_6, window_bounds = array<i64: 1, 128>}, {transform_indices = @transform_7, window_bounds = array<i64: 8, 128>}]} {
    %c0_i32 = arith.constant 0 : i32
    %0 = arith.cmpi eq, %arg1, %c0_i32 : i32
    %1 = arith.extui %0 : i1 to i32
    %c0_i32_0 = arith.constant 0 : i32
    %2 = arith.cmpi ne, %1, %c0_i32_0 : i32
    scf.if %2 {
      %cst_21 = arith.constant 0.000000e+00 : f32
      %35 = vector.broadcast %cst_21 : f32 to vector<8x128xf32>
      %c0_22 = arith.constant 0 : index
      %c0_23 = arith.constant 0 : index
      %36 = vector.load %arg9[%c0_22, %c0_23] : memref<8x128xf32, #tpu.memory_space<vmem>>, vector<8x128xf32>
      tpu.vector_store %arg9[%c0_22, %c0_23], %35 {strides = array<i32>} : memref<8x128xf32, #tpu.memory_space<vmem>>, vector<8x128xf32>,
    } else {
    }
    %c0 = arith.constant 0 : index
    %c0_1 = arith.constant 0 : index
    %3 = vector.load %arg2[%c0, %c0_1] : memref<8x128xf32, #tpu.memory_space<vmem>>, vector<8x128xf32>
    %c128_i32 = arith.constant 128 : i32
    %4 = arith.muli %arg1, %c128_i32 : i32
    %5 = tpu.assume_multiple %4, 128 : i32
    %c0_2 = arith.constant 0 : index
    %6 = arith.index_cast %5 : i32 to index
    %7 = vector.load %arg6[%c0_2, %6] : memref<1x128xf32, #tpu.memory_space<vmem>>, vector<1x128xf32>
    %c0_3 = arith.constant 0 : index
    %8 = arith.index_cast %5 : i32 to index
    %9 = vector.load %arg7[%c0_3, %8] : memref<1x128xf32, #tpu.memory_space<vmem>>, vector<1x128xf32>
    %c0_4 = arith.constant 0 : index
    %c0_5 = arith.constant 0 : index
    %10 = vector.load %arg3[%c0_4, %c0_5] : memref<128x128xf32, #tpu.memory_space<vmem>>, vector<128x128xf32>
    %cst = arith.constant dense<0.000000e+00> : vector<8x128xf32>
    %11 = tpu.matmul %3, %10, %cst {dimension_numbers = #tpu.dot_dimension_numbers<[1], [0], [0], [1], [0, 0, 1, 1], [], []>} : vector<8x128xf32>, vector<128x128xf32>, vector<8x128xf32> -> vector<8x128xf32>
    %12 = vector.broadcast %7 : vector<1x128xf32> to vector<8x128xf32>
    %13 = arith.addf %11, %12 : vector<8x128xf32>
    %c0_6 = arith.constant 0 : index
    %c0_7 = arith.constant 0 : index
    %14 = vector.load %arg4[%c0_6, %c0_7] : memref<128x128xf32, #tpu.memory_space<vmem>>, vector<128x128xf32>
    %cst_8 = arith.constant dense<0.000000e+00> : vector<8x128xf32>
    %15 = tpu.matmul %3, %14, %cst_8 {dimension_numbers = #tpu.dot_dimension_numbers<[1], [0], [0], [1], [0, 0, 1, 1], [], []>} : vector<8x128xf32>, vector<128x128xf32>, vector<8x128xf32> -> vector<8x128xf32>
    %16 = vector.broadcast %9 : vector<1x128xf32> to vector<8x128xf32>
    %17 = arith.addf %15, %16 : vector<8x128xf32>
    %cst_9 = arith.constant 5.000000e-01 : f32
    %18 = vector.broadcast %cst_9 : f32 to vector<8x128xf32>
    %19 = arith.mulf %18, %13 : vector<8x128xf32>
    %20 = arith.mulf %19, %17 : vector<8x128xf32>
    %cst_10 = arith.constant 0.707106769 : f32
    %21 = vector.broadcast %cst_10 : f32 to vector<8x128xf32>
    %22 = arith.mulf %17, %21 : vector<8x128xf32>
    %23 = math.erf %22 : vector<8x128xf32>
    %cst_11 = arith.constant 1.000000e+00 : f32
    %24 = vector.broadcast %cst_11 : f32 to vector<8x128xf32>
    %25 = arith.addf %24, %23 : vector<8x128xf32>
    %26 = arith.mulf %20, %25 : vector<8x128xf32>
    %c0_12 = arith.constant 0 : index
    %c0_13 = arith.constant 0 : index
    %27 = vector.load %arg9[%c0_12, %c0_13] : memref<8x128xf32, #tpu.memory_space<vmem>>, vector<8x128xf32>
    %c0_14 = arith.constant 0 : index
    %c0_15 = arith.constant 0 : index
    %28 = vector.load %arg5[%c0_14, %c0_15] : memref<128x128xf32, #tpu.memory_space<vmem>>, vector<128x128xf32>
    %cst_16 = arith.constant dense<0.000000e+00> : vector<8x128xf32>
    %29 = tpu.matmul %26, %28, %cst_16 {dimension_numbers = #tpu.dot_dimension_numbers<[1], [0], [0], [1], [0, 0, 1, 1], [], []>} : vector<8x128xf32>, vector<128x128xf32>, vector<8x128xf32> -> vector<8x128xf32>
    %30 = arith.addf %27, %29 : vector<8x128xf32>
    %c0_17 = arith.constant 0 : index
    %c0_18 = arith.constant 0 : index
    %31 = vector.load %arg9[%c0_17, %c0_18] : memref<8x128xf32, #tpu.memory_space<vmem>>, vector<8x128xf32>
    tpu.vector_store %arg9[%c0_17, %c0_18], %30 {strides = array<i32>} : memref<8x128xf32, #tpu.memory_space<vmem>>, vector<8x128xf32>,
    %c0_i32_19 = arith.constant 0 : i32
    %32 = arith.cmpi eq, %arg1, %c0_i32_19 : i32
    %33 = arith.extui %32 : i1 to i32
    %c0_i32_20 = arith.constant 0 : i32
    %34 = arith.cmpi ne, %33, %c0_i32_20 : i32
    scf.if %34 {
      %c0_21 = arith.constant 0 : index
      %c0_22 = arith.constant 0 : index
      %35 = vector.load %arg9[%c0_21, %c0_22] : memref<8x128xf32, #tpu.memory_space<vmem>>, vector<8x128xf32>
      %c0_23 = arith.constant 0 : index
      %c0_24 = arith.constant 0 : index
      %36 = vector.load %arg8[%c0_23, %c0_24] : memref<1x128xf32, #tpu.memory_space<vmem>>, vector<1x128xf32>
      %37 = vector.broadcast %36 : vector<1x128xf32> to vector<8x128xf32>
      %38 = arith.addf %35, %37 : vector<8x128xf32>
      %c0_25 = arith.constant 0 : index
      %c0_26 = arith.constant 0 : index
      %39 = vector.load %arg9[%c0_25, %c0_26] : memref<8x128xf32, #tpu.memory_space<vmem>>, vector<8x128xf32>
      tpu.vector_store %arg9[%c0_25, %c0_26], %38 {strides = array<i32>} : memref<8x128xf32, #tpu.memory_space<vmem>>, vector<8x128xf32>,
    } else {
    }
    return
  }
  func.func @transform_0(%arg0: i32, %arg1: i32) -> (i32, i32) {
    %c0_i32 = arith.constant 0 : i32
    %c0_i32_0 = arith.constant 0 : i32
    return %arg0, %c0_i32 : i32, i32
  }
  func.func @transform_1(%arg0: i32, %arg1: i32) -> (i32, i32) {
    %c0_i32 = arith.constant 0 : i32
    %c0_i32_0 = arith.constant 0 : i32
    return %c0_i32, %arg1 : i32, i32
  }
  func.func @transform_2(%arg0: i32, %arg1: i32) -> (i32, i32) {
    %c1_i32 = arith.constant 1 : i32
    %0 = arith.addi %arg1, %c1_i32 : i32
    %c0_i32 = arith.constant 0 : i32
    %c0_i32_0 = arith.constant 0 : i32
    return %c0_i32, %0 : i32, i32
  }
  func.func @transform_3(%arg0: i32, %arg1: i32) -> (i32, i32) {
    %c0_i32 = arith.constant 0 : i32
    %c0_i32_0 = arith.constant 0 : i32
    return %arg1, %c0_i32 : i32, i32
  }
  func.func @transform_4(%arg0: i32, %arg1: i32) -> (i32, i32) {
    %c0_i32 = arith.constant 0 : i32
    %c0_i32_0 = arith.constant 0 : i32
    %c0_i32_1 = arith.constant 0 : i32
    return %c0_i32, %c0_i32_0 : i32, i32
  }
  func.func @transform_5(%arg0: i32, %arg1: i32) -> (i32, i32) {
    %c0_i32 = arith.constant 0 : i32
    %c0_i32_0 = arith.constant 0 : i32
    %c0_i32_1 = arith.constant 0 : i32
    return %c0_i32, %c0_i32_0 : i32, i32
  }
  func.func @transform_6(%arg0: i32, %arg1: i32) -> (i32, i32) {
    %c0_i32 = arith.constant 0 : i32
    %c0_i32_0 = arith.constant 0 : i32
    %c0_i32_1 = arith.constant 0 : i32
    return %c0_i32, %c0_i32_0 : i32, i32
  }
  func.func @transform_7(%arg0: i32, %arg1: i32) -> (i32, i32) {
    %c0_i32 = arith.constant 0 : i32
    %c0_i32_0 = arith.constant 0 : i32
    return %arg0, %c0_i32 : i32, i32
  }
}

</mosaic_0001>

<llo_original>
// kernel: tpu_custom_call.1
$region0: #{tpu_custom_call.1}
  #allocation0 [shape = 'u32[]', space=smem, size = 0x4, offset = 0x4, fixed_abs, tag = 'smem constant byte address 0x4 - core index']
  #allocation1 [shape = 'u32[72,128]{1,0:T(1,128)}', space=vmem, size = 0x9000, scoped, tag = 'internal scratch']
  %s0 = inlined_call_operand.hbm [shape: f32[16,128], index: 0, kind: input, shape index: {}]
  %s1 = inlined_call_operand.hbm [shape: f32[128,256], index: 1, kind: input, shape index: {}]
  %s2 = inlined_call_operand.hbm [shape: f32[128,256], index: 2, kind: input, shape index: {}]
  %s3 = inlined_call_operand.hbm [shape: f32[128,128], index: 3, kind: input, shape index: {}]
  %s4 = inlined_call_operand.vmem [shape: f32[1,128], index: 4, kind: input, shape index: {}]
  %s5 = inlined_call_operand.vmem [shape: f32[1,128], index: 5, kind: input, shape index: {}]
  %s6 = inlined_call_operand.vmem [shape: f32[1,128], index: 6, kind: input, shape index: {}]
  %s7 = inlined_call_operand.hbm [shape: f32[16,128], index: 7, kind: output, shape index: {}]
  %s8 = sld [smem:[#allocation0]]
  $region85: #{tpu_custom_call.1} parent=0
    _
  %s10 = ssub.s32 1, %s8
  %s11 = scalar_select 0, %s10, %s8
  $region1: #{tpu_custom_call.1} parent=0
    #allocation2 [shape = 'u8[8192]{0}', space=vmem, size = 0x2000, scoped, tag = 'input window, operand 0']
    #allocation3 [shape = 's32[2]{0}', space=sflag, size = 0x8, scoped, tag = 'scoped memory for tpu_custom_call.1']
    #allocation4 [shape = 's32[2]{0}', space=sflag, size = 0x8, scoped, tag = 'scoped memory for tpu_custom_call.1']
    #allocation5 [shape = 'u8[65536]{0}', space=vmem, size = 0x10000, scoped, tag = 'input window, operand 1, single buffered']
    #allocation6 [shape = 's32[1]{0}', space=sflag, size = 0x4, scoped, tag = 'scoped memory for tpu_custom_call.1']
    #allocation7 [shape = 'u8[65536]{0}', space=vmem, size = 0x10000, scoped, tag = 'input window, operand 2, single buffered']
    #allocation8 [shape = 'u8[65536]{0}', space=vmem, size = 0x10000, scoped, tag = 'input window, operand 3, single buffered']
    #allocation9 [shape = 's32[1]{0}', space=sflag, size = 0x4, scoped, tag = 'scoped memory for tpu_custom_call.1']
    #allocation10 [shape = 'u8[8192]{0}', space=vmem, size = 0x2000, scoped, tag = 'output window, operand 0']
    %12 = vsyncpa [#allocation3], 0
    %s13 = scalar_lea.sflag [#allocation3], 1
    %14 = vsyncpa %s13, 0
    %15 = vsyncpa [#allocation6], 0
    %16 = vsyncpa [#allocation9], 0
    %17 = vsyncpa [#allocation4], 0
    %s18 = scalar_lea.sflag [#allocation4], 1
    %19 = vsyncpa %s18, 0
    loop: start=0, step=1, limit=4
    $region2: #{tpu_custom_call.1} parent=1 // loop_pre_header
      _
    $region3: #{tpu_custom_call.1} parent=1 // loop_header
      %s21 = sphi 0, %s25
      %p22 = scmp.ge.s32.totalorder %s21, 4
      %s28 = sphi 0, %s40
      %s29 = sphi 0, %s36
      %s30 = sphi 0, %s28
      %s31 = sphi 0, %s29
      %s32 = sphi 0, %s30
      %s33 = sphi 0, %s31
      %s43 = sphi 0, %s45
      %s46 = sphi 0, %s43
      %s47 = sphi 0, %s46
      %s63 = sphi 0, %s47
      %s69 = sphi 0, %s71
      %s72 = sphi 0, %s69
      %s73 = sphi 0, %s72
      %s89 = sphi 0, %s73
      %s97 = sphi 0, %s99
      %s100 = sphi 0, %s97
      %s101 = sphi 0, %s100
      %s117 = sphi 0, %s101
      %s123 = sphi 0, %s125
      %s126 = sphi 0, %s123
      %s127 = sphi 0, %s126
      %s143 = sphi 0, %s127
      %s147 = sphi 0, %s147
      %s149 = sphi 0, %s147
      %s150 = sphi 0, %s149
      %s164 = sphi 0, %s150
      %s168 = sphi 0, %s168
      %s170 = sphi 0, %s168
      %s171 = sphi 0, %s170
      %s185 = sphi 0, %s171
      %s189 = sphi 0, %s189
      %s191 = sphi 0, %s189
      %s192 = sphi 0, %s191
      %s206 = sphi 0, %s192
      %s212 = sphi 0, %s214
      %s215 = sphi 0, %s212
      %s216 = sphi 0, %s215
      %s232 = sphi 0, %s216
    $region4: #{tpu_custom_call.1} parent=1 // loop_header_branch
      %24 = sbr.rel (%p22) target = $region8
    $region5: #{tpu_custom_call.1} parent=1 // loop_body
      %s26 = ssub.s32 %s21, 1
      %s27 = ssub.s32 %s21, 2
      %s34 = sadd.s32 1, %s29
      %p35 = scmp.ge.s32.totalorder %s34, 1
      %s36 = scalar_select %p35, 0, %s34
      %s37 = sadd.s32 1, %s28
      %s38 = scalar_select %p35, %s37, %s28
      %p39 = scmp.ge.s32.totalorder %s38, 2
      %s40 = scalar_select %p39, 0, %s38
      %s41 = ssub.s32 %s28, %s40
      %p42 = scmp.eq.s32.totalorder %s41, 0
      %s44 = sadd.s32 %s43, 1
      %s45 = scalar_select %p42, %s43, %s44
      %p48 = pneg %p42
      %p49 = scmp.eq.s32.totalorder %s21, 1
      %p50 = por %p48, %p49
      %p51 = scmp.ne.s32.totalorder %s43, %s46
      %p52 = scmp.eq.s32.totalorder %s21, 0
      %p53 = por %p51, %p52
      %p54 = scmp.ne.s32.totalorder %s43, %s46
      %p55 = scmp.eq.s32.totalorder %s26, 1
      %p56 = por %p54, %p55
      %p57 = scmp.ne.s32.totalorder %s46, %s47
      %p58 = scmp.eq.s32.totalorder %s26, 0
      %p59 = por %p57, %p58
      %p60 = scmp.ne.s32.totalorder %s46, %s47
      %p61 = scmp.eq.s32.totalorder %s27, 1
      %p62 = por %p60, %p61
      %p64 = scmp.ne.s32.totalorder %s47, %s63
      %p65 = scmp.eq.s32.totalorder %s27, 0
      %p66 = por %p64, %p65
      %s67 = ssub.s32 %s29, %s36
      %p68 = scmp.eq.s32.totalorder %s67, 0
      %s70 = sadd.s32 %s69, 1
      %s71 = scalar_select %p68, %s69, %s70
      %p74 = pneg %p68
      %p75 = scmp.eq.s32.totalorder %s21, 1
      %p76 = por %p74, %p75
      %p77 = scmp.ne.s32.totalorder %s69, %s72
      %p78 = scmp.eq.s32.totalorder %s21, 0
      %p79 = por %p77, %p78
      %p80 = scmp.ne.s32.totalorder %s69, %s72
      %p81 = scmp.eq.s32.totalorder %s26, 1
      %p82 = por %p80, %p81
      %p83 = scmp.ne.s32.totalorder %s72, %s73
      %p84 = scmp.eq.s32.totalorder %s26, 0
      %p85 = por %p83, %p84
      %p86 = scmp.ne.s32.totalorder %s72, %s73
      %p87 = scmp.eq.s32.totalorder %s27, 1
      %p88 = por %p86, %p87
      %p90 = scmp.ne.s32.totalorder %s73, %s89
      %p91 = scmp.eq.s32.totalorder %s27, 0
      %p92 = por %p90, %p91
      %s93 = sadd.s32 %s29, 1
      %s94 = sadd.s32 %s36, 1
      %s95 = ssub.s32 %s93, %s94
      %p96 = scmp.eq.s32.totalorder %s95, 0
      %s98 = sadd.s32 %s97, 1
      %s99 = scalar_select %p96, %s97, %s98
      %p102 = pneg %p96
      %p103 = scmp.eq.s32.totalorder %s21, 1
      %p104 = por %p102, %p103
      %p105 = scmp.ne.s32.totalorder %s97, %s100
      %p106 = scmp.eq.s32.totalorder %s21, 0
      %p107 = por %p105, %p106
      %p108 = scmp.ne.s32.totalorder %s97, %s100
      %p109 = scmp.eq.s32.totalorder %s26, 1
      %p110 = por %p108, %p109
      %p111 = scmp.ne.s32.totalorder %s100, %s101
      %p112 = scmp.eq.s32.totalorder %s26, 0
      %p113 = por %p111, %p112
      %p114 = scmp.ne.s32.totalorder %s100, %s101
      %p115 = scmp.eq.s32.totalorder %s27, 1
      %p116 = por %p114, %p115
      %p118 = scmp.ne.s32.totalorder %s101, %s117
      %p119 = scmp.eq.s32.totalorder %s27, 0
      %p120 = por %p118, %p119
      %s121 = ssub.s32 %s29, %s36
      %p122 = scmp.eq.s32.totalorder %s121, 0
      %s124 = sadd.s32 %s123, 1
      %s125 = scalar_select %p122, %s123, %s124
      %p128 = pneg %p122
      %p129 = scmp.eq.s32.totalorder %s21, 1
      %p130 = por %p128, %p129
      %p131 = scmp.ne.s32.totalorder %s123, %s126
      %p132 = scmp.eq.s32.totalorder %s21, 0
      %p133 = por %p131, %p132
      %p134 = scmp.ne.s32.totalorder %s123, %s126
      %p135 = scmp.eq.s32.totalorder %s26, 1
      %p136 = por %p134, %p135
      %p137 = scmp.ne.s32.totalorder %s126, %s127
      %p138 = scmp.eq.s32.totalorder %s26, 0
      %p139 = por %p137, %p138
      %p140 = scmp.ne.s32.totalorder %s126, %s127
      %p141 = scmp.eq.s32.totalorder %s27, 1
      %p142 = por %p140, %p141
      %p144 = scmp.ne.s32.totalorder %s127, %s143
      %p145 = scmp.eq.s32.totalorder %s27, 0
      %p146 = por %p144, %p145
      %s148 = sadd.s32 %s147, 1
      %p151 = scmp.eq.s32.totalorder %s21, 1
      %p152 = scmp.ne.s32.totalorder %s147, %s149
      %p153 = scmp.eq.s32.totalorder %s21, 0
      %p154 = por %p152, %p153
      %p155 = scmp.ne.s32.totalorder %s147, %s149
      %p156 = scmp.eq.s32.totalorder %s26, 1
      %p157 = por %p155, %p156
      %p158 = scmp.ne.s32.totalorder %s149, %s150
      %p159 = scmp.eq.s32.totalorder %s26, 0
      %p160 = por %p158, %p159
      %p161 = scmp.ne.s32.totalorder %s149, %s150
      %p162 = scmp.eq.s32.totalorder %s27, 1
      %p163 = por %p161, %p162
      %p165 = scmp.ne.s32.totalorder %s150, %s164
      %p166 = scmp.eq.s32.totalorder %s27, 0
      %p167 = por %p165, %p166
      %s169 = sadd.s32 %s168, 1
      %p172 = scmp.eq.s32.totalorder %s21, 1
      %p173 = scmp.ne.s32.totalorder %s168, %s170
      %p174 = scmp.eq.s32.totalorder %s21, 0
      %p175 = por %p173, %p174
      %p176 = scmp.ne.s32.totalorder %s168, %s170
      %p177 = scmp.eq.s32.totalorder %s26, 1
      %p178 = por %p176, %p177
      %p179 = scmp.ne.s32.totalorder %s170, %s171
      %p180 = scmp.eq.s32.totalorder %s26, 0
      %p181 = por %p179, %p180
      %p182 = scmp.ne.s32.totalorder %s170, %s171
      %p183 = scmp.eq.s32.totalorder %s27, 1
      %p184 = por %p182, %p183
      %p186 = scmp.ne.s32.totalorder %s171, %s185
      %p187 = scmp.eq.s32.totalorder %s27, 0
      %p188 = por %p186, %p187
      %s190 = sadd.s32 %s189, 1
      %p193 = scmp.eq.s32.totalorder %s21, 1
      %p194 = scmp.ne.s32.totalorder %s189, %s191
      %p195 = scmp.eq.s32.totalorder %s21, 0
      %p196 = por %p194, %p195
      %p197 = scmp.ne.s32.totalorder %s189, %s191
      %p198 = scmp.eq.s32.totalorder %s26, 1
      %p199 = por %p197, %p198
      %p200 = scmp.ne.s32.totalorder %s191, %s192
      %p201 = scmp.eq.s32.totalorder %s26, 0
      %p202 = por %p200, %p201
      %p203 = scmp.ne.s32.totalorder %s191, %s192
      %p204 = scmp.eq.s32.totalorder %s27, 1
      %p205 = por %p203, %p204
      %p207 = scmp.ne.s32.totalorder %s192, %s206
      %p208 = scmp.eq.s32.totalorder %s27, 0
      %p209 = por %p207, %p208
      %s210 = ssub.s32 %s28, %s40
      %p211 = scmp.eq.s32.totalorder %s210, 0
      %s213 = sadd.s32 %s212, 1
      %s214 = scalar_select %p211, %s212, %s213
      %p217 = pneg %p211
      %p218 = scmp.eq.s32.totalorder %s21, 1
      %p219 = por %p217, %p218
      %p220 = scmp.ne.s32.totalorder %s212, %s215
      %p221 = scmp.eq.s32.totalorder %s21, 0
      %p222 = por %p220, %p221
      %p223 = scmp.ne.s32.totalorder %s212, %s215
      %p224 = scmp.eq.s32.totalorder %s26, 1
      %p225 = por %p223, %p224
      %p226 = scmp.ne.s32.totalorder %s215, %s216
      %p227 = scmp.eq.s32.totalorder %s26, 0
      %p228 = por %p226, %p227
      %p229 = scmp.ne.s32.totalorder %s215, %s216
      %p230 = scmp.eq.s32.totalorder %s27, 1
      %p231 = por %p229, %p230
      %p233 = scmp.ne.s32.totalorder %s216, %s232
      %p234 = scmp.eq.s32.totalorder %s27, 0
      %p235 = por %p233, %p234
      %p236 = scmp.le.s32.totalorder 1, %s21
      %p237 = scmp.lt.s32.totalorder %s21, 3
      %p238 = pnand %p236, %p237
      %p239 = pneg %p238
      // Predicated region
      $region9: #{tpu_custom_call.1} parent=5 // pred_check
        _
      $region10: #{tpu_custom_call.1} parent=5 // pred_check_branch
        %241 = sbr.rel (%p238) target = $region12
      $region11: #{tpu_custom_call.1} parent=5 // pred_region
        %s242 = ssub.s32 %s21, 1
        // Predicated region
        $region13: #{tpu_custom_call.1} parent=11 // pred_check
          %p243 = pneg %p85
        $region14: #{tpu_custom_call.1} parent=11 // pred_check_branch
          %245 = sbr.rel (%p243) target = $region16
        $region15: #{tpu_custom_call.1} parent=11 // pred_region
          %247 = vsyncadd [#allocation6], 0
          %s248 = smul.addr %s31, 8
          %s249 = scalar_lea.hbm %s1, %s248
          %s250 = sshll.u32 %s249, 4
          %s251 = int_to_ptr.hbm [resolvable:$true] %s250
          %s252 = sshll.u32 [#allocation5], 4
          %s253 = int_to_ptr.vmem [resolvable:$true] %s252
          %258 = dma.hbm_to_vmem [thread:$0]  %s251, 2048, %s253, [#allocation6], 256, 128, 8
        $region16: #{tpu_custom_call.1} parent=11 // pred_fallthru
          _
        // Predicated region
        $region17: #{tpu_custom_call.1} parent=11 // pred_check
          %p259 = pneg %p113
        $region18: #{tpu_custom_call.1} parent=11 // pred_check_branch
          %261 = sbr.rel (%p259) target = $region20
        $region19: #{tpu_custom_call.1} parent=11 // pred_region
          %s262 = sadd.s32 %s31, 1
          %264 = vsyncadd [#allocation6], 0
          %s265 = smul.addr %s262, 8
          %s266 = scalar_lea.hbm %s2, %s265
          %s267 = sshll.u32 %s266, 4
          %s268 = int_to_ptr.hbm [resolvable:$true] %s267
          %s269 = sshll.u32 [#allocation7], 4
          %s270 = int_to_ptr.vmem [resolvable:$true] %s269
          %275 = dma.hbm_to_vmem [thread:$0]  %s268, 2048, %s270, [#allocation6], 256, 128, 8
        $region20: #{tpu_custom_call.1} parent=11 // pred_fallthru
          _
        // Predicated region
        $region21: #{tpu_custom_call.1} parent=11 // pred_check
          %p276 = pneg %p139
        $region22: #{tpu_custom_call.1} parent=11 // pred_check_branch
          %278 = sbr.rel (%p276) target = $region24
        $region23: #{tpu_custom_call.1} parent=11 // pred_region
          %s279 = smul.u32 16, %s31
          %281 = vsyncadd [#allocation9], 0
          %s282 = smul.addr %s279, 8
          %s283 = scalar_lea.hbm %s3, %s282
          %s284 = sshll.u32 %s283, 4
          %s285 = int_to_ptr.hbm [resolvable:$true] %s284
          %s286 = sshll.u32 [#allocation8], 4
          %s287 = int_to_ptr.vmem [resolvable:$true] %s286
          %292 = dma.hbm_to_vmem [thread:$0]  %s285, 2048, %s287, [#allocation9], 128, 128, 8
        $region24: #{tpu_custom_call.1} parent=11 // pred_fallthru
          _
        // Predicated region
        $region25: #{tpu_custom_call.1} parent=11 // pred_check
          %p293 = pneg %p160
        $region26: #{tpu_custom_call.1} parent=11 // pred_check_branch
          %295 = sbr.rel (%p293) target = $region28
        $region27: #{tpu_custom_call.1} parent=11 // pred_region
          _
        $region28: #{tpu_custom_call.1} parent=11 // pred_fallthru
          _
        // Predicated region
        $region29: #{tpu_custom_call.1} parent=11 // pred_check
          %p296 = pneg %p181
        $region30: #{tpu_custom_call.1} parent=11 // pred_check_branch
          %298 = sbr.rel (%p296) target = $region32
        $region31: #{tpu_custom_call.1} parent=11 // pred_region
          _
        $region32: #{tpu_custom_call.1} parent=11 // pred_fallthru
          _
        // Predicated region
        $region33: #{tpu_custom_call.1} parent=11 // pred_check
          %p299 = pneg %p202
        $region34: #{tpu_custom_call.1} parent=11 // pred_check_branch
          %301 = sbr.rel (%p299) target = $region36
        $region35: #{tpu_custom_call.1} parent=11 // pred_region
          _
        $region36: #{tpu_custom_call.1} parent=11 // pred_fallthru
          _
      $region12: #{tpu_custom_call.1} parent=5 // pred_fallthru
        _
      %p302 = scmp.lt.s32.totalorder %s21, 2
      // Predicated region
      $region37: #{tpu_custom_call.1} parent=5 // pred_check
        %p303 = pneg %p302
      $region38: #{tpu_custom_call.1} parent=5 // pred_check_branch
        %305 = sbr.rel (%p303) target = $region40
      $region39: #{tpu_custom_call.1} parent=5 // pred_region
        // Predicated region
        $region41: #{tpu_custom_call.1} parent=39 // pred_check
          %p306 = pneg %p53
        $region42: #{tpu_custom_call.1} parent=39 // pred_check_branch
          %308 = sbr.rel (%p306) target = $region44
        $region43: #{tpu_custom_call.1} parent=39 // pred_region
          %s309 = sand.u32 %s43, 1
          %s310 = scalar_lea.sflag [#allocation3], %s309
          %s311 = sand.u32 %s43, 1
          %s312 = smul.addr %s311, 8
          %s313 = scalar_lea.vmem [#allocation2], %s312
          %315 = vsyncadd %s310, 0
          %s316 = smul.addr %s28, 8
          %s317 = scalar_lea.hbm %s0, %s316
          %s319 = sshll.u32 %s317, 4
          %s320 = int_to_ptr.hbm [resolvable:$true] %s319
          %s321 = sshll.u32 %s313, 4
          %s322 = int_to_ptr.vmem [resolvable:$true] %s321
          %324 = dma.hbm_to_vmem [thread:$0]  %s320, 128, %s322, %s310
        $region44: #{tpu_custom_call.1} parent=39 // pred_fallthru
          _
      $region40: #{tpu_custom_call.1} parent=5 // pred_fallthru
        _
      %p325 = scmp.le.s32.totalorder 1, %s21
      %p326 = scmp.lt.s32.totalorder %s21, 3
      %p327 = pnand %p325, %p326
      %p328 = pneg %p327
      // Predicated region
      $region45: #{tpu_custom_call.1} parent=5 // pred_check
        _
      $region46: #{tpu_custom_call.1} parent=5 // pred_check_branch
        %330 = sbr.rel (%p327) target = $region48
      $region47: #{tpu_custom_call.1} parent=5 // pred_region
        %s331 = ssub.s32 %s21, 1
        %s332 = sand.u32 %s46, 1
        %s333 = scalar_lea.sflag [#allocation3], %s332
        %s334 = sand.u32 %s46, 1
        %s335 = smul.addr %s334, 8
        %s336 = scalar_lea.vmem [#allocation2], %s335
        // Predicated region
        $region49: #{tpu_custom_call.1} parent=47 // pred_check
          %p337 = pneg %p59
        $region50: #{tpu_custom_call.1} parent=47 // pred_check_branch
          %339 = sbr.rel (%p337) target = $region52
        $region51: #{tpu_custom_call.1} parent=47 // pred_region
          %341 = dma.done %s333, 128
        $region52: #{tpu_custom_call.1} parent=47 // pred_fallthru
          _
        // Predicated region
        $region53: #{tpu_custom_call.1} parent=47 // pred_check
          %p342 = pneg %p85
        $region54: #{tpu_custom_call.1} parent=47 // pred_check_branch
          %344 = sbr.rel (%p342) target = $region56
        $region55: #{tpu_custom_call.1} parent=47 // pred_region
          %346 = dma.done [#allocation6], 2048
        $region56: #{tpu_custom_call.1} parent=47 // pred_fallthru
          _
        // Predicated region
        $region57: #{tpu_custom_call.1} parent=47 // pred_check
          %p347 = pneg %p113
        $region58: #{tpu_custom_call.1} parent=47 // pred_check_branch
          %349 = sbr.rel (%p347) target = $region60
        $region59: #{tpu_custom_call.1} parent=47 // pred_region
          %351 = dma.done [#allocation6], 2048
        $region60: #{tpu_custom_call.1} parent=47 // pred_fallthru
          _
        // Predicated region
        $region61: #{tpu_custom_call.1} parent=47 // pred_check
          %p352 = pneg %p139
        $region62: #{tpu_custom_call.1} parent=47 // pred_check_branch
          %354 = sbr.rel (%p352) target = $region64
        $region63: #{tpu_custom_call.1} parent=47 // pred_region
          %356 = dma.done [#allocation9], 2048
        $region64: #{tpu_custom_call.1} parent=47 // pred_fallthru
          _
        %s357 = sand.u32 %s46, 1
        %s358 = scalar_lea.sflag [#allocation3], %s357
        %s359 = sand.u32 %s46, 1
        %s360 = smul.addr %s359, 8
        %s361 = scalar_lea.vmem [#allocation2], %s360
        %p362 = pneg %p59
        %p363 = pneg %p56
        %p364 = pneg %p85
        %p365 = pneg %p82
        %p366 = pneg %p113
        %p367 = pneg %p110
        %p368 = pneg %p139
        %p369 = pneg %p136
        %p370 = pneg %p160
        %p371 = pneg %p157
        %p372 = pneg %p181
        %p373 = pneg %p178
        %p374 = pneg %p202
        %p375 = pneg %p199
        %p376 = pneg %p228
        %p377 = pneg %p225
        %s378 = sand.u32 %s215, 1
        %s379 = scalar_lea.sflag [#allocation4], %s378
        %s380 = sand.u32 %s215, 1
        %s381 = smul.addr %s380, 8
        %s382 = scalar_lea.vmem [#allocation10], %s381
        %s383 = sadd.s32 %s31, 1
        %s384 = smul.u32 16, %s31
        %p385 = scmp.eq.s32.totalorder %s31, 0
        // Predicated region
        $region65: #{tpu_custom_call.1} parent=47 // pred_check
          %p386 = pneg %p385
        $region66: #{tpu_custom_call.1} parent=47 // pred_check_branch
          %388 = sbr.rel (%p386) target = $region68
        $region67: #{tpu_custom_call.1} parent=47 // pred_region
          %389 = vst [vmem:[%s382] sm:$0xff] 0.0
        $region68: #{tpu_custom_call.1} parent=47 // pred_fallthru
          _
        %v390 = vld [vmem:[%s336] sm:$0xff]
        %s391 = smul.u32 %s31, 128
        %s392 = sshra.s32 %s391, 7
        %s393 = sand.u32 %s391, 127
        %s394 = scalar_lea.vmem %s4, %s392
        %v395 = vld [vmem:[%s394] sm:$0x1]
        %s396 = scalar_lea.vmem %s5, %s392
        %v397 = vld [vmem:[%s396] sm:$0x1]
        %v398 = vld [vmem:[#allocation5] sm:$0xff]
        %v399 = vld [vmem:[#allocation5 + $0x8] sm:$0xff]
        %v400 = vld [vmem:[#allocation5 + $0x10] sm:$0xff]
        %v401 = vld [vmem:[#allocation5 + $0x18] sm:$0xff]
        %v402 = vld [vmem:[#allocation5 + $0x20] sm:$0xff]
        %v403 = vld [vmem:[#allocation5 + $0x28] sm:$0xff]
        %v404 = vld [vmem:[#allocation5 + $0x30] sm:$0xff]
        %v405 = vld [vmem:[#allocation5 + $0x38] sm:$0xff]
        %v406 = vld [vmem:[#allocation5 + $0x40] sm:$0xff]
        %v407 = vld [vmem:[#allocation5 + $0x48] sm:$0xff]
        %v408 = vld [vmem:[#allocation5 + $0x50] sm:$0xff]
        %v409 = vld [vmem:[#allocation5 + $0x58] sm:$0xff]
        %v410 = vld [vmem:[#allocation5 + $0x60] sm:$0xff]
        %v411 = vld [vmem:[#allocation5 + $0x68] sm:$0xff]
        %v412 = vld [vmem:[#allocation5 + $0x70] sm:$0xff]
        %v413 = vld [vmem:[#allocation5 + $0x78] sm:$0xff]
        %v415 = vperm.slane %v395, 0
        %417 = vmatpush.msra.mxu0 %v413
        %418 = vmatpush.msra.mxu0 %v412
        %419 = vmatpush.msra.mxu0 %v411
        %420 = vmatpush.msra.mxu0 %v410
        %421 = vmatpush.msra.mxu0 %v409
        %422 = vmatpush.msra.mxu0 %v408
        %423 = vmatpush.msra.mxu0 %v407
        %424 = vmatpush.msra.mxu0 %v406
        %425 = vmatpush.msra.mxu0 %v405
        %426 = vmatpush.msra.mxu0 %v404
        %427 = vmatpush.msra.mxu0 %v403
        %428 = vmatpush.msra.mxu0 %v402
        %429 = vmatpush.msra.mxu0 %v401
        %430 = vmatpush.msra.mxu0 %v400
        %431 = vmatpush.msra.mxu0 %v399
        %432 = vmatpush.msra.mxu0 %v398
        %433 = vmatmul.f32.gmra.mxu0 %v390
        %v434 = vpop.f32.mrf.mxu0
        %v435 = vadd.f32 %v415, %v434
        %436 = vdwg.mxu0
        %v437 = vld [vmem:[#allocation7] sm:$0xff]
        %v438 = vld [vmem:[#allocation7 + $0x8] sm:$0xff]
        %v439 = vld [vmem:[#allocation7 + $0x10] sm:$0xff]
        %v440 = vld [vmem:[#allocation7 + $0x18] sm:$0xff]
        %v441 = vld [vmem:[#allocation7 + $0x20] sm:$0xff]
        %v442 = vld [vmem:[#allocation7 + $0x28] sm:$0xff]
        %v443 = vld [vmem:[#allocation7 + $0x30] sm:$0xff]
        %v444 = vld [vmem:[#allocation7 + $0x38] sm:$0xff]
        %v445 = vld [vmem:[#allocation7 + $0x40] sm:$0xff]
        %v446 = vld [vmem:[#allocation7 + $0x48] sm:$0xff]
        %v447 = vld [vmem:[#allocation7 + $0x50] sm:$0xff]
        %v448 = vld [vmem:[#allocation7 + $0x58] sm:$0xff]
        %v449 = vld [vmem:[#allocation7 + $0x60] sm:$0xff]
        %v450 = vld [vmem:[#allocation7 + $0x68] sm:$0xff]
        %v451 = vld [vmem:[#allocation7 + $0x70] sm:$0xff]
        %v452 = vld [vmem:[#allocation7 + $0x78] sm:$0xff]
        %v454 = vperm.slane %v397, 0
        %456 = vmatpush.msra.mxu0 %v452
        %457 = vmatpush.msra.mxu0 %v451
        %458 = vmatpush.msra.mxu0 %v450
        %459 = vmatpush.msra.mxu0 %v449
        %460 = vmatpush.msra.mxu0 %v448
        %461 = vmatpush.msra.mxu0 %v447
        %462 = vmatpush.msra.mxu0 %v446
        %463 = vmatpush.msra.mxu0 %v445
        %464 = vmatpush.msra.mxu0 %v444
        %465 = vmatpush.msra.mxu0 %v443
        %466 = vmatpush.msra.mxu0 %v442
        %467 = vmatpush.msra.mxu0 %v441
        %468 = vmatpush.msra.mxu0 %v440
        %469 = vmatpush.msra.mxu0 %v439
        %470 = vmatpush.msra.mxu0 %v438
        %471 = vmatpush.msra.mxu0 %v437
        %472 = vmatmul.f32.gmra.mxu0 %v390
        %v473 = vpop.f32.mrf.mxu0
        %v474 = vadd.f32 %v454, %v473
        %475 = vdwg.mxu0
        %v476 = vmul.f32 %v435, 0.5
        %v477 = vmul.f32 %v476, %v474
        %v478 = vmul.f32 %v474, 0.70710677
        %v479 = vmul.f32 %v478, %v478
        %v480 = vmin.f32 16.0, %v479
        %v481 = vmul.f32 %v480, 2.1237322e-06
        %v482 = vadd.f32 %v481, 0.00028619796
        %v483 = vmul.f32 %v480, %v482
        %v484 = vadd.f32 %v483, 0.0036580483
        %v485 = vmul.f32 %v480, %v484
        %v486 = vadd.f32 %v485, 0.05243302
        %v487 = vmul.f32 %v480, %v486
        %v488 = vadd.f32 %v487, 0.18741608
        %v489 = vmul.f32 %v480, %v488
        %v490 = vadd.f32 %v489, 1.1283791
        %v491 = vmul.f32 %v478, %v490
        %v492 = vmul.f32 %v480, 3.8918573e-05
        %v493 = vadd.f32 %v492, 0.001143296
        %v494 = vmul.f32 %v480, %v493
        %v495 = vadd.f32 %v494, 0.014752088
        %v496 = vmul.f32 %v480, %v495
        %v497 = vadd.f32 %v496, 0.112945676
        %v498 = vmul.f32 %v480, %v497
        %v499 = vadd.f32 %v498, 0.4994258
        %v500 = vmul.f32 %v480, %v499
        %v501 = vadd.f32 %v500, 1.0
        %v502 = vrcp.pop %v501
        %v503 = vmul.f32 %v501, %v502
        %v504 = vsub.f32 1.0, %v503
        %v505 = vmul.f32 %v502, %v504
        %v506 = vadd.f32 %v502, %v505
        %vm507 = vweird.f32 %v501
        %vm508 = vweird.f32 %v502
        %vm509 = vmor %vm507, %vm508
        %v510 = vsel %vm509, %v502, %v506
        %v511 = vand.u32 2147483647, %v501
        %vm512 = vcmp.eq.f32.partialorder %v511, 8.507059e+37
        %v513 = vand.u32 %v501, 2147483648
        %v514 = vor.u32 1.1754944e-38, %v513
        %v515 = vsel %vm512, %v514, %v510
        %v516 = vmul.f32 %v491, %v515
        %v517 = vmin.f32 %v516, 1.0
        %v518 = vmax.f32 %v517, -1.0
        %v519 = vadd.f32 %v518, 1.0
        %v520 = vmul.f32 %v477, %v519
        %v521 = vld [vmem:[%s382] sm:$0xff]
        %v522 = vld [vmem:[#allocation8] sm:$0xff]
        %v523 = vld [vmem:[#allocation8 + $0x8] sm:$0xff]
        %v524 = vld [vmem:[#allocation8 + $0x10] sm:$0xff]
        %v525 = vld [vmem:[#allocation8 + $0x18] sm:$0xff]
        %v526 = vld [vmem:[#allocation8 + $0x20] sm:$0xff]
        %v527 = vld [vmem:[#allocation8 + $0x28] sm:$0xff]
        %v528 = vld [vmem:[#allocation8 + $0x30] sm:$0xff]
        %v529 = vld [vmem:[#allocation8 + $0x38] sm:$0xff]
        %v530 = vld [vmem:[#allocation8 + $0x40] sm:$0xff]
        %v531 = vld [vmem:[#allocation8 + $0x48] sm:$0xff]
        %v532 = vld [vmem:[#allocation8 + $0x50] sm:$0xff]
        %v533 = vld [vmem:[#allocation8 + $0x58] sm:$0xff]
        %v534 = vld [vmem:[#allocation8 + $0x60] sm:$0xff]
        %v535 = vld [vmem:[#allocation8 + $0x68] sm:$0xff]
        %v536 = vld [vmem:[#allocation8 + $0x70] sm:$0xff]
        %v537 = vld [vmem:[#allocation8 + $0x78] sm:$0xff]
        %538 = vmatpush.msra.mxu0 %v537
        %539 = vmatpush.msra.mxu0 %v536
        %540 = vmatpush.msra.mxu0 %v535
        %541 = vmatpush.msra.mxu0 %v534
        %542 = vmatpush.msra.mxu0 %v533
        %543 = vmatpush.msra.mxu0 %v532
        %544 = vmatpush.msra.mxu0 %v531
        %545 = vmatpush.msra.mxu0 %v530
        %546 = vmatpush.msra.mxu0 %v529
        %547 = vmatpush.msra.mxu0 %v528
        %548 = vmatpush.msra.mxu0 %v527
        %549 = vmatpush.msra.mxu0 %v526
        %550 = vmatpush.msra.mxu0 %v525
        %551 = vmatpush.msra.mxu0 %v524
        %552 = vmatpush.msra.mxu0 %v523
        %553 = vmatpush.msra.mxu0 %v522
        %554 = vmatmul.f32.gmra.mxu0 %v520
        %v555 = vpop.f32.mrf.mxu0
        %v556 = vadd.f32 0.0, %v555
        %557 = vdwg.mxu0
        %v558 = vadd.f32 %v521, %v556
        %559 = vst [vmem:[%s382] sm:$0xff] %v558
        // Predicated region
        $region69: #{tpu_custom_call.1} parent=47 // pred_check
          %p560 = pneg %p385
        $region70: #{tpu_custom_call.1} parent=47 // pred_check_branch
          %562 = sbr.rel (%p560) target = $region72
        $region71: #{tpu_custom_call.1} parent=47 // pred_region
          %v563 = vld [vmem:[%s382] sm:$0xff]
          %v564 = vld [vmem:[%s6] sm:$0x1]
          %v566 = vperm.slane %v564, 0
          %v568 = vadd.f32 %v563, %v566
          %569 = vst [vmem:[%s382] sm:$0xff] %v568
        $region72: #{tpu_custom_call.1} parent=47 // pred_fallthru
          _
        %s570 = sand.u32 %s215, 1
        %s571 = scalar_lea.sflag [#allocation4], %s570
        %s572 = sand.u32 %s215, 1
        %s573 = smul.addr %s572, 8
        %s574 = scalar_lea.vmem [#allocation10], %s573
        // Predicated region
        $region73: #{tpu_custom_call.1} parent=47 // pred_check
          %p575 = pneg %p225
        $region74: #{tpu_custom_call.1} parent=47 // pred_check_branch
          %577 = sbr.rel (%p575) target = $region76
        $region75: #{tpu_custom_call.1} parent=47 // pred_region
          %579 = vsyncadd %s571, 0
          %s580 = smul.addr %s30, 8
          %s581 = scalar_lea.hbm %s7, %s580
          %s583 = sshll.u32 %s574, 4
          %s584 = int_to_ptr.vmem [resolvable:$true] %s583
          %s585 = sshll.u32 %s581, 4
          %s586 = int_to_ptr.hbm [resolvable:$true] %s585
          %588 = dma.vmem_to_hbm [thread:$0]  %s584, 128, %s586, %s571
        $region76: #{tpu_custom_call.1} parent=47 // pred_fallthru
          _
      $region48: #{tpu_custom_call.1} parent=5 // pred_fallthru
        _
      %p589 = scmp.le.s32.totalorder 2, %s21
      // Predicated region
      $region77: #{tpu_custom_call.1} parent=5 // pred_check
        %p590 = pneg %p589
      $region78: #{tpu_custom_call.1} parent=5 // pred_check_branch
        %592 = sbr.rel (%p590) target = $region80
      $region79: #{tpu_custom_call.1} parent=5 // pred_region
        %s593 = ssub.s32 %s21, 2
        // Predicated region
        $region81: #{tpu_custom_call.1} parent=79 // pred_check
          %p594 = pneg %p231
        $region82: #{tpu_custom_call.1} parent=79 // pred_check_branch
          %596 = sbr.rel (%p594) target = $region84
        $region83: #{tpu_custom_call.1} parent=79 // pred_region
          %s597 = sand.u32 %s216, 1
          %s598 = scalar_lea.sflag [#allocation4], %s597
          %s599 = sand.u32 %s216, 1
          %s600 = smul.addr %s599, 8
          %s601 = scalar_lea.vmem [#allocation10], %s600
          %603 = dma.done %s598, 128
        $region84: #{tpu_custom_call.1} parent=79 // pred_fallthru
          _
      $region80: #{tpu_custom_call.1} parent=5 // pred_fallthru
        _
    $region6: #{tpu_custom_call.1} parent=1 // loop_footer
      %s25 = sadd.s32 1, %s21
    $region7: #{tpu_custom_call.1} parent=1 // loop_footer_branch
      %20 = sbr.rel target = $region3
    $region8: #{tpu_custom_call.1} parent=1 // loop_exit
      _
    %604 = vsyncpa [#allocation3], 1
    %s605 = scalar_lea.sflag [#allocation3], 1
    %606 = vsyncpa %s605, 1
    %607 = vsyncpa [#allocation6], 1
    %608 = vsyncpa [#allocation9], 1
    %609 = vsyncpa [#allocation4], 1
    %s610 = scalar_lea.sflag [#allocation4], 1
    %611 = vsyncpa %s610, 1

</llo_original>
